<compile_context>
chip_gen: v5e
topology: v5e:2x2
jax: 0.10.0
libtpu: 0.0.40
codegen_flags: <defaults>
</compile_context>

<pallas_src>
import jax
import jax.numpy as jnp
from jax.experimental import pallas as pl
from jax.experimental.pallas import tpu as pltpu


def _seg_head_kernel(x_ref, w_ref, b_ref, o_ref):
    # x_ref: (tm, C) bf16, w_ref: (C, NUM_CLASSES) bf16,
    # b_ref: (1, NUM_CLASSES) f32, o_ref: (tm, NUM_CLASSES) f32
    acc = jnp.dot(x_ref[...], w_ref[...], preferred_element_type=jnp.float32)
    o_ref[...] = (acc + b_ref[...]).astype(o_ref.dtype)


def seg_head_forward(x, weight, bias, *, tm=1024, compute_dtype=jnp.bfloat16):
    """Forward of SegHead (nn.Linear).

    x:      [N, C]            (f32)
    weight: [num_classes, C]  (PyTorch nn.Linear layout, f32)
    bias:   [num_classes]     (f32)
    returns [N, num_classes]  (x.dtype)
    """
    N, C = x.shape
    num_classes = weight.shape[0]

    # --- row-tile selection -------------------------------------------------
    # Big tiles amortize the ~0.35us per-grid-step cost, but keep >= 2 grid
    # steps when N allows so the "parallel" grid axis can use both v7x TCs.
    if N <= tm:
        if N > 256:
            tm = 128 * pl.cdiv(pl.cdiv(N, 2), 128)   # ~half of N, 128-aligned
        else:
            tm = N                                   # tiny input: one full block
    n_blocks = pl.cdiv(N, tm)

    # HBM-resident operands in bf16 (in a real model W^T / bias would be cast
    # and cached once, not per call).
    x_c = x.astype(compute_dtype)
    w_t = weight.T.astype(compute_dtype)                        # [C, num_classes]
    b2d = bias.reshape(1, num_classes).astype(jnp.float32)      # broadcast row

    return pl.pallas_call(
        _seg_head_kernel,
        out_shape=jax.ShapeDtypeStruct((N, num_classes), x.dtype),
        grid_spec=pltpu.PrefetchScalarGridSpec(
            num_scalar_prefetch=0,
            grid=(n_blocks,),
            in_specs=[
                pl.BlockSpec((tm, C), lambda i: (i, 0)),            # x row tile
                pl.BlockSpec((C, num_classes), lambda i: (0, 0)),   # full W^T (loop-invariant)
                pl.BlockSpec((1, num_classes), lambda i: (0, 0)),   # bias row (loop-invariant)
            ],
            out_specs=pl.BlockSpec((tm, num_classes), lambda i: (i, 0)),
        ),
        compiler_params=pltpu.CompilerParams(
            dimension_semantics=("parallel",),
        ),
    )(x_c, w_t, b2d)


if __name__ == "__main__":
    # Small, deterministic shapes consistent with SegHead(backbone_out_channels,
    # num_classes). N is deliberately NOT a multiple of the tile to exercise the
    # clamped boundary block.
    backbone_out_channels = 32
    num_classes = 13
    n_points = 1000

    key = jax.random.PRNGKey(0)
    kx, kw, kb = jax.random.split(key, 3)

    x = jax.random.normal(kx, (n_points, backbone_out_channels), dtype=jnp.float32)
    weight = jax.random.normal(kw, (num_classes, backbone_out_channels), dtype=jnp.float32) * 0.1
    bias = jax.random.normal(kb, (num_classes,), dtype=jnp.float32) * 0.01

    out = seg_head_forward(x, weight, bias)
    out = jax.block_until_ready(out)
    assert out.shape == (n_points, num_classes)
    assert out.dtype == x.dtype

    # Reference matching the kernel's numerics (bf16 inputs, f32 accumulate).
    xb = x.astype(jnp.bfloat16).astype(jnp.float32)
    wb = weight.astype(jnp.bfloat16).astype(jnp.float32)
    ref_bf16 = jnp.dot(xb, wb.T, precision=jax.lax.Precision.HIGHEST) + bias
    assert jnp.allclose(out, ref_bf16, atol=1e-4, rtol=1e-4), "mismatch vs bf16 reference"

    # Loose check against the pure-f32 nn.Linear reference (bf16 input rounding).
    ref_f32 = jnp.dot(x, weight.T, precision=jax.lax.Precision.HIGHEST) + bias
    assert jnp.allclose(out, ref_f32, atol=5e-2, rtol=5e-2), "mismatch vs f32 reference"

    print("KERNEL_OK")
</pallas_src>

<mosaic_0001>
module attributes {stable_mosaic.version = 11 : i64} {
  func.func @_seg_head_kernel(%arg0: i32, %arg1: memref<512x32xbf16, #tpu.memory_space<vmem>>, %arg2: memref<32x13xbf16, #tpu.memory_space<vmem>>, %arg3: memref<1x13xf32, #tpu.memory_space<vmem>>, %arg4: memref<512x13xf32, #tpu.memory_space<vmem>>) attributes {dimension_semantics = [#tpu.dimension_semantics<parallel>], iteration_bounds = array<i64: 2>, scalar_prefetch = 0 : i64, scratch_operands = 0 : i64, tpu.core_type = #tpu.core_type<tc>, window_params = [{transform_indices = @transform_0, window_bounds = array<i64: 512, 32>}, {pipeline_mode = #tpu.pipeline_mode<synchronous>, transform_indices = @transform_1, window_bounds = array<i64: 32, 13>}, {pipeline_mode = #tpu.pipeline_mode<synchronous>, transform_indices = @transform_2, window_bounds = array<i64: 1, 13>}, {transform_indices = @transform_3, window_bounds = array<i64: 512, 13>}]} {
    %c0 = arith.constant 0 : index
    %c0_0 = arith.constant 0 : index
    %0 = vector.load %arg1[%c0, %c0_0] : memref<512x32xbf16, #tpu.memory_space<vmem>>, vector<512x32xbf16>
    %c0_1 = arith.constant 0 : index
    %c0_2 = arith.constant 0 : index
    %1 = vector.load %arg2[%c0_1, %c0_2] : memref<32x13xbf16, #tpu.memory_space<vmem>>, vector<32x13xbf16>
    %cst = arith.constant dense<0.000000e+00> : vector<512x13xf32>
    %2 = tpu.matmul %0, %1, %cst {dimension_numbers = #tpu.dot_dimension_numbers<[1], [0], [0], [1], [0, 0, 1, 1], [], []>} : vector<512x32xbf16>, vector<32x13xbf16>, vector<512x13xf32> -> vector<512x13xf32>
    %c0_3 = arith.constant 0 : index
    %c0_4 = arith.constant 0 : index
    %3 = vector.load %arg3[%c0_3, %c0_4] : memref<1x13xf32, #tpu.memory_space<vmem>>, vector<1x13xf32>
    %4 = vector.broadcast %3 : vector<1x13xf32> to vector<512x13xf32>
    %5 = arith.addf %2, %4 : vector<512x13xf32>
    %c0_5 = arith.constant 0 : index
    %c0_6 = arith.constant 0 : index
    %6 = vector.load %arg4[%c0_5, %c0_6] : memref<512x13xf32, #tpu.memory_space<vmem>>, vector<512x13xf32>
    tpu.vector_store %arg4[%c0_5, %c0_6], %5 {strides = array<i32>} : memref<512x13xf32, #tpu.memory_space<vmem>>, vector<512x13xf32>,
    return
  }
  func.func @transform_0(%arg0: i32) -> (i32, i32) {
    %c0_i32 = arith.constant 0 : i32
    %c0_i32_0 = arith.constant 0 : i32
    return %arg0, %c0_i32 : i32, i32
  }
  func.func @transform_1(%arg0: i32) -> (i32, i32) {
    %c0_i32 = arith.constant 0 : i32
    %c0_i32_0 = arith.constant 0 : i32
    %c0_i32_1 = arith.constant 0 : i32
    return %c0_i32, %c0_i32_0 : i32, i32
  }
  func.func @transform_2(%arg0: i32) -> (i32, i32) {
    %c0_i32 = arith.constant 0 : i32
    %c0_i32_0 = arith.constant 0 : i32
    %c0_i32_1 = arith.constant 0 : i32
    return %c0_i32, %c0_i32_0 : i32, i32
  }
  func.func @transform_3(%arg0: i32) -> (i32, i32) {
    %c0_i32 = arith.constant 0 : i32
    %c0_i32_0 = arith.constant 0 : i32
    return %arg0, %c0_i32 : i32, i32
  }
}

</mosaic_0001>

<llo_original>
// kernel: tpu_custom_call.1
$region0: #{tpu_custom_call.1}
  #allocation0 [shape = 'u32[]', space=smem, size = 0x4, offset = 0x4, fixed_abs, tag = 'smem constant byte address 0x4 - core index']
  #allocation1 [shape = 'u32[72,128]{1,0:T(1,128)}', space=vmem, size = 0x9000, scoped, tag = 'internal scratch']
  %s0 = inlined_call_operand.vmem [shape: bf16[1000,32], index: 0, kind: input, shape index: {}]
  %s1 = inlined_call_operand.vmem [shape: bf16[32,13], index: 1, kind: input, shape index: {}]
  %s2 = inlined_call_operand.vmem [shape: f32[1,13], index: 2, kind: input, shape index: {}]
  %s3 = inlined_call_operand.vmem [shape: f32[1000,13], index: 3, kind: output, shape index: {}]
  %s4 = sld [smem:[#allocation0]]
  $region93: #{tpu_custom_call.1} parent=0
    _
  %s6 = ssub.s32 1, %s4
  %s7 = scalar_select 0, %s6, %s4
  $region1: #{tpu_custom_call.1} parent=0
    #allocation2 [shape = 'u8[524288]{0}', space=vmem, size = 0x80000, scoped, tag = 'output window, operand 0']
    loop: start=0, step=1, limit=4
    $region2: #{tpu_custom_call.1} parent=1 // loop_pre_header
      _
    $region3: #{tpu_custom_call.1} parent=1 // loop_header
      %s9 = sphi 0, %s13
      %p10 = scmp.ge.s32.totalorder %s9, 4
      %s19 = sphi 0, %s21
      %s22 = sphi 0, %s19
      %s23 = sphi 0, %s22
      %s39 = sphi 0, %s23
      %s43 = sphi 0, %s43
      %s45 = sphi 0, %s43
      %s46 = sphi 0, %s45
      %s60 = sphi 0, %s46
      %s64 = sphi 0, %s64
      %s66 = sphi 0, %s64
      %s67 = sphi 0, %s66
      %s81 = sphi 0, %s67
      %s87 = sphi 0, %s89
      %s90 = sphi 0, %s87
      %s91 = sphi 0, %s90
      %s107 = sphi 0, %s91
    $region4: #{tpu_custom_call.1} parent=1 // loop_header_branch
      %12 = sbr.rel (%p10) target = $region8
    $region5: #{tpu_custom_call.1} parent=1 // loop_body
      %s14 = ssub.s32 %s9, 1
      %s15 = ssub.s32 %s9, 2
      %s16 = sadd.s32 %s9, 1
      %s17 = ssub.s32 %s9, %s16
      %p18 = scmp.eq.s32.totalorder %s17, 0
      %s20 = sadd.s32 %s19, 1
      %s21 = scalar_select %p18, %s19, %s20
      %p24 = pneg %p18
      %p25 = scmp.eq.s32.totalorder %s9, 1
      %p26 = por %p24, %p25
      %p27 = scmp.ne.s32.totalorder %s19, %s22
      %p28 = scmp.eq.s32.totalorder %s9, 0
      %p29 = por %p27, %p28
      %p30 = scmp.ne.s32.totalorder %s19, %s22
      %p31 = scmp.eq.s32.totalorder %s14, 1
      %p32 = por %p30, %p31
      %p33 = scmp.ne.s32.totalorder %s22, %s23
      %p34 = scmp.eq.s32.totalorder %s14, 0
      %p35 = por %p33, %p34
      %p36 = scmp.ne.s32.totalorder %s22, %s23
      %p37 = scmp.eq.s32.totalorder %s15, 1
      %p38 = por %p36, %p37
      %p40 = scmp.ne.s32.totalorder %s23, %s39
      %p41 = scmp.eq.s32.totalorder %s15, 0
      %p42 = por %p40, %p41
      %s44 = sadd.s32 %s43, 1
      %p47 = scmp.eq.s32.totalorder %s9, 1
      %p48 = scmp.ne.s32.totalorder %s43, %s45
      %p49 = scmp.eq.s32.totalorder %s9, 0
      %p50 = por %p48, %p49
      %p51 = scmp.ne.s32.totalorder %s43, %s45
      %p52 = scmp.eq.s32.totalorder %s14, 1
      %p53 = por %p51, %p52
      %p54 = scmp.ne.s32.totalorder %s45, %s46
      %p55 = scmp.eq.s32.totalorder %s14, 0
      %p56 = por %p54, %p55
      %p57 = scmp.ne.s32.totalorder %s45, %s46
      %p58 = scmp.eq.s32.totalorder %s15, 1
      %p59 = por %p57, %p58
      %p61 = scmp.ne.s32.totalorder %s46, %s60
      %p62 = scmp.eq.s32.totalorder %s15, 0
      %p63 = por %p61, %p62
      %s65 = sadd.s32 %s64, 1
      %p68 = scmp.eq.s32.totalorder %s9, 1
      %p69 = scmp.ne.s32.totalorder %s64, %s66
      %p70 = scmp.eq.s32.totalorder %s9, 0
      %p71 = por %p69, %p70
      %p72 = scmp.ne.s32.totalorder %s64, %s66
      %p73 = scmp.eq.s32.totalorder %s14, 1
      %p74 = por %p72, %p73
      %p75 = scmp.ne.s32.totalorder %s66, %s67
      %p76 = scmp.eq.s32.totalorder %s14, 0
      %p77 = por %p75, %p76
      %p78 = scmp.ne.s32.totalorder %s66, %s67
      %p79 = scmp.eq.s32.totalorder %s15, 1
      %p80 = por %p78, %p79
      %p82 = scmp.ne.s32.totalorder %s67, %s81
      %p83 = scmp.eq.s32.totalorder %s15, 0
      %p84 = por %p82, %p83
      %s85 = ssub.s32 %s9, %s16
      %p86 = scmp.eq.s32.totalorder %s85, 0
      %s88 = sadd.s32 %s87, 1
      %s89 = scalar_select %p86, %s87, %s88
      %p92 = pneg %p86
      %p93 = scmp.eq.s32.totalorder %s9, 1
      %p94 = por %p92, %p93
      %p95 = scmp.ne.s32.totalorder %s87, %s90
      %p96 = scmp.eq.s32.totalorder %s9, 0
      %p97 = por %p95, %p96
      %p98 = scmp.ne.s32.totalorder %s87, %s90
      %p99 = scmp.eq.s32.totalorder %s14, 1
      %p100 = por %p98, %p99
      %p101 = scmp.ne.s32.totalorder %s90, %s91
      %p102 = scmp.eq.s32.totalorder %s14, 0
      %p103 = por %p101, %p102
      %p104 = scmp.ne.s32.totalorder %s90, %s91
      %p105 = scmp.eq.s32.totalorder %s15, 1
      %p106 = por %p104, %p105
      %p108 = scmp.ne.s32.totalorder %s91, %s107
      %p109 = scmp.eq.s32.totalorder %s15, 0
      %p110 = por %p108, %p109
      %p111 = scmp.le.s32.totalorder 1, %s9
      %p112 = scmp.lt.s32.totalorder %s9, 3
      %p113 = pnand %p111, %p112
      %p114 = pneg %p113
      // Predicated region
      $region9: #{tpu_custom_call.1} parent=5 // pred_check
        _
      $region10: #{tpu_custom_call.1} parent=5 // pred_check_branch
        %116 = sbr.rel (%p113) target = $region12
      $region11: #{tpu_custom_call.1} parent=5 // pred_region
        %s117 = ssub.s32 %s9, 1
        // Predicated region
        $region13: #{tpu_custom_call.1} parent=11 // pred_check
          %p118 = pneg %p56
        $region14: #{tpu_custom_call.1} parent=11 // pred_check_branch
          %120 = sbr.rel (%p118) target = $region16
        $region15: #{tpu_custom_call.1} parent=11 // pred_region
          _
        $region16: #{tpu_custom_call.1} parent=11 // pred_fallthru
          _
        // Predicated region
        $region17: #{tpu_custom_call.1} parent=11 // pred_check
          %p121 = pneg %p77
        $region18: #{tpu_custom_call.1} parent=11 // pred_check_branch
          %123 = sbr.rel (%p121) target = $region20
        $region19: #{tpu_custom_call.1} parent=11 // pred_region
          _
        $region20: #{tpu_custom_call.1} parent=11 // pred_fallthru
          _
      $region12: #{tpu_custom_call.1} parent=5 // pred_fallthru
        _
      %p124 = scmp.lt.s32.totalorder %s9, 2
      // Predicated region
      $region21: #{tpu_custom_call.1} parent=5 // pred_check
        %p125 = pneg %p124
      $region22: #{tpu_custom_call.1} parent=5 // pred_check_branch
        %127 = sbr.rel (%p125) target = $region24
      $region23: #{tpu_custom_call.1} parent=5 // pred_region
        // Predicated region
        $region25: #{tpu_custom_call.1} parent=23 // pred_check
          %p128 = pneg %p29
        $region26: #{tpu_custom_call.1} parent=23 // pred_check_branch
          %130 = sbr.rel (%p128) target = $region28
        $region27: #{tpu_custom_call.1} parent=23 // pred_region
          %s131 = smul.u32 64, %s9
          %s132 = ssub.s32 125, %s131
          %p133 = scmp.lt.s32.totalorder %s132, 64
          %s134 = scalar_select %p133, %s132, 64
          %s135 = smul.u32 4, %s134
          %p136 = scmp.lt.s32.totalorder %s131, 124
          %s137 = scalar_select %p136, %s131, 124
          %s138 = smul.addr %s137, 4
          %s139 = scalar_lea.vmem %s0, %s138
          %s140 = smul.u32 64, %s9
          %s141 = ssub.s32 125, %s140
          %p142 = scmp.lt.s32.totalorder %s141, 64
          %s143 = scalar_select %p142, %s141, 64
          %s144 = smul.u32 4, %s143
        $region28: #{tpu_custom_call.1} parent=23 // pred_fallthru
          _
      $region24: #{tpu_custom_call.1} parent=5 // pred_fallthru
        _
      %p145 = scmp.le.s32.totalorder 1, %s9
      %p146 = scmp.lt.s32.totalorder %s9, 3
      %p147 = pnand %p145, %p146
      %p148 = pneg %p147
      // Predicated region
      $region29: #{tpu_custom_call.1} parent=5 // pred_check
        _
      $region30: #{tpu_custom_call.1} parent=5 // pred_check_branch
        %150 = sbr.rel (%p147) target = $region32
      $region31: #{tpu_custom_call.1} parent=5 // pred_region
        %s151 = ssub.s32 %s9, 1
        %s152 = smul.u32 64, %s14
        %s153 = ssub.s32 125, %s152
        %p154 = scmp.lt.s32.totalorder %s153, 64
        %s155 = scalar_select %p154, %s153, 64
        %s156 = smul.u32 4, %s155
        %p157 = scmp.lt.s32.totalorder %s152, 124
        %s158 = scalar_select %p157, %s152, 124
        %s159 = smul.addr %s158, 4
        %s160 = scalar_lea.vmem %s0, %s159
        %p161 = pneg %p35
        %p162 = pneg %p32
        %p163 = pneg %p56
        %p164 = pneg %p53
        %p165 = pneg %p77
        %p166 = pneg %p74
        %p167 = pneg %p103
        %p168 = pneg %p100
        %s169 = sand.u32 %s90, 1
        %s170 = sand.u32 %s90, 1
        %s171 = smul.addr %s170, 512
        %s172 = scalar_lea.vmem [#allocation2], %s171
        %s173 = smul.u32 64, %s14
        %s174 = ssub.s32 125, %s173
        %p175 = scmp.lt.s32.totalorder %s174, 64
        %s176 = scalar_select %p175, %s174, 64
        %s177 = smul.u32 4, %s176
        %p178 = scmp.lt.s32.totalorder %s173, 124
        %s179 = scalar_select %p178, %s173, 124
        %s180 = smul.addr %s179, 4
        %s181 = scalar_lea.vmem %s0, %s180
        %s182 = smul.u32 64, %s14
        %s183 = ssub.s32 125, %s182
        %p184 = scmp.lt.s32.totalorder %s183, 64
        %s185 = scalar_select %p184, %s183, 64
        %s186 = smul.u32 4, %s185
        %s187 = smul.u32 64, %s14
        %s188 = ssub.s32 125, %s187
        %p189 = scmp.lt.s32.totalorder %s188, 64
        %s190 = scalar_select %p189, %s188, 64
        %s191 = smul.u32 8, %s190
        %v193 = vld [vmem:[%s181] sm:$0xf]
        %v194 = vld [vmem:[%s181 + $0x4] sm:$0xf]
        %v195 = vld [vmem:[%s181 + $0x8] sm:$0xf]
        %v196 = vld [vmem:[%s181 + $0xc] sm:$0xf]
        %v197 = vld [vmem:[%s181 + $0x10] sm:$0xf]
        %v198 = vld [vmem:[%s181 + $0x14] sm:$0xf]
        %v199 = vld [vmem:[%s181 + $0x18] sm:$0xf]
        %v200 = vld [vmem:[%s181 + $0x1c] sm:$0xf]
        %v201 = vld [vmem:[%s181 + $0x20] sm:$0xf]
        %v202 = vld [vmem:[%s181 + $0x24] sm:$0xf]
        %v203 = vld [vmem:[%s181 + $0x28] sm:$0xf]
        %v204 = vld [vmem:[%s181 + $0x2c] sm:$0xf]
        %v205 = vld [vmem:[%s181 + $0x30] sm:$0xf]
        %v206 = vld [vmem:[%s181 + $0x34] sm:$0xf]
        %v207 = vld [vmem:[%s181 + $0x38] sm:$0xf]
        %v208 = vld [vmem:[%s181 + $0x3c] sm:$0xf]
        %v209 = vld [vmem:[%s181 + $0x40] sm:$0xf]
        %v210 = vld [vmem:[%s181 + $0x44] sm:$0xf]
        %v211 = vld [vmem:[%s181 + $0x48] sm:$0xf]
        %v212 = vld [vmem:[%s181 + $0x4c] sm:$0xf]
        %v213 = vld [vmem:[%s181 + $0x50] sm:$0xf]
        %v214 = vld [vmem:[%s181 + $0x54] sm:$0xf]
        %v215 = vld [vmem:[%s181 + $0x58] sm:$0xf]
        %v216 = vld [vmem:[%s181 + $0x5c] sm:$0xf]
        %v217 = vld [vmem:[%s181 + $0x60] sm:$0xf]
        %v218 = vld [vmem:[%s181 + $0x64] sm:$0xf]
        %v219 = vld [vmem:[%s181 + $0x68] sm:$0xf]
        %v220 = vld [vmem:[%s181 + $0x6c] sm:$0xf]
        %v221 = vld [vmem:[%s181 + $0x70] sm:$0xf]
        %v222 = vld [vmem:[%s181 + $0x74] sm:$0xf]
        %v223 = vld [vmem:[%s181 + $0x78] sm:$0xf]
        %v224 = vld [vmem:[%s181 + $0x7c] sm:$0xf]
        %v225 = vld [vmem:[%s181 + $0x80] sm:$0xf]
        %v226 = vld [vmem:[%s181 + $0x84] sm:$0xf]
        %v227 = vld [vmem:[%s181 + $0x88] sm:$0xf]
        %v228 = vld [vmem:[%s181 + $0x8c] sm:$0xf]
        %v229 = vld [vmem:[%s181 + $0x90] sm:$0xf]
        %v230 = vld [vmem:[%s181 + $0x94] sm:$0xf]
        %v231 = vld [vmem:[%s181 + $0x98] sm:$0xf]
        %v232 = vld [vmem:[%s181 + $0x9c] sm:$0xf]
        %v233 = vld [vmem:[%s181 + $0xa0] sm:$0xf]
        %v234 = vld [vmem:[%s181 + $0xa4] sm:$0xf]
        %v235 = vld [vmem:[%s181 + $0xa8] sm:$0xf]
        %v236 = vld [vmem:[%s181 + $0xac] sm:$0xf]
        %v237 = vld [vmem:[%s181 + $0xb0] sm:$0xf]
        %v238 = vld [vmem:[%s181 + $0xb4] sm:$0xf]
        %v239 = vld [vmem:[%s181 + $0xb8] sm:$0xf]
        %v240 = vld [vmem:[%s181 + $0xbc] sm:$0xf]
        %v241 = vld [vmem:[%s181 + $0xc0] sm:$0xf]
        %v242 = vld [vmem:[%s181 + $0xc4] sm:$0xf]
        %v243 = vld [vmem:[%s181 + $0xc8] sm:$0xf]
        %v244 = vld [vmem:[%s181 + $0xcc] sm:$0xf]
        %v245 = vld [vmem:[%s181 + $0xd0] sm:$0xf]
        %v246 = vld [vmem:[%s181 + $0xd4] sm:$0xf]
        %v247 = vld [vmem:[%s181 + $0xd8] sm:$0xf]
        %v248 = vld [vmem:[%s181 + $0xdc] sm:$0xf]
        %v249 = vld [vmem:[%s181 + $0xe0] sm:$0xf]
        %v250 = vld [vmem:[%s181 + $0xe4] sm:$0xf]
        %v251 = vld [vmem:[%s181 + $0xe8] sm:$0xf]
        %v252 = vld [vmem:[%s181 + $0xec] sm:$0xf]
        %v253 = vld [vmem:[%s181 + $0xf0] sm:$0xf]
        %v254 = vld [vmem:[%s181 + $0xf4] sm:$0xf]
        %v255 = vld [vmem:[%s181 + $0xf8] sm:$0xf]
        %v256 = vld [vmem:[%s181 + $0xfc] sm:$0xf]
        %v257 = vld [vmem:[%s1] sm:$0xf]
        %v258 = vld [vmem:[%s1 + $0x4] sm:$0xf]
        %v259 = vld [vmem:[%s1 + $0x8] sm:$0xf]
        %v260 = vld [vmem:[%s1 + $0xc] sm:$0xf]
        %v261 = vld [vmem:[%s2] sm:$0x1]
        %v263 = vperm.slane %v261, 0
        %v329 = vunpack.c.l.b16 %v193
        %v330 = vunpack.c.l.b16 %v194
        %v331 = vunpack.c.l.b16 %v195
        %v332 = vunpack.c.l.b16 %v196
        %v333 = vunpack.c.l.b16 %v197
        %v334 = vunpack.c.l.b16 %v198
        %v335 = vunpack.c.l.b16 %v199
        %v336 = vunpack.c.l.b16 %v200
        %v337 = vunpack.c.l.b16 %v201
        %v338 = vunpack.c.l.b16 %v202
        %v339 = vunpack.c.l.b16 %v203
        %v340 = vunpack.c.l.b16 %v204
        %v341 = vunpack.c.l.b16 %v205
        %v342 = vunpack.c.l.b16 %v206
        %v343 = vunpack.c.l.b16 %v207
        %v344 = vunpack.c.l.b16 %v208
        %v345 = vunpack.c.l.b16 %v209
        %v346 = vunpack.c.l.b16 %v210
        %v347 = vunpack.c.l.b16 %v211
        %v348 = vunpack.c.l.b16 %v212
        %v349 = vunpack.c.l.b16 %v213
        %v350 = vunpack.c.l.b16 %v214
        %v351 = vunpack.c.l.b16 %v215
        %v352 = vunpack.c.l.b16 %v216
        %v353 = vunpack.c.l.b16 %v217
        %v354 = vunpack.c.l.b16 %v218
        %v355 = vunpack.c.l.b16 %v219
        %v356 = vunpack.c.l.b16 %v220
        %v357 = vunpack.c.l.b16 %v221
        %v358 = vunpack.c.l.b16 %v222
        %v359 = vunpack.c.l.b16 %v223
        %v360 = vunpack.c.l.b16 %v224
        %v361 = vunpack.c.l.b16 %v225
        %v362 = vunpack.c.l.b16 %v226
        %v363 = vunpack.c.l.b16 %v227
        %v364 = vunpack.c.l.b16 %v228
        %v365 = vunpack.c.l.b16 %v229
        %v366 = vunpack.c.l.b16 %v230
        %v367 = vunpack.c.l.b16 %v231
        %v368 = vunpack.c.l.b16 %v232
        %v369 = vunpack.c.l.b16 %v233
        %v370 = vunpack.c.l.b16 %v234
        %v371 = vunpack.c.l.b16 %v235
        %v372 = vunpack.c.l.b16 %v236
        %v373 = vunpack.c.l.b16 %v237
        %v374 = vunpack.c.l.b16 %v238
        %v375 = vunpack.c.l.b16 %v239
        %v376 = vunpack.c.l.b16 %v240
        %v377 = vunpack.c.l.b16 %v241
        %v378 = vunpack.c.l.b16 %v242
        %v379 = vunpack.c.l.b16 %v243
        %v380 = vunpack.c.l.b16 %v244
        %v381 = vunpack.c.l.b16 %v245
        %v382 = vunpack.c.l.b16 %v246
        %v383 = vunpack.c.l.b16 %v247
        %v384 = vunpack.c.l.b16 %v248
        %v385 = vunpack.c.l.b16 %v249
        %v386 = vunpack.c.l.b16 %v250
        %v387 = vunpack.c.l.b16 %v251
        %v388 = vunpack.c.l.b16 %v252
        %v389 = vunpack.c.l.b16 %v253
        %v390 = vunpack.c.l.b16 %v254
        %v391 = vunpack.c.l.b16 %v255
        %v392 = vunpack.c.l.b16 %v256
        %v393 = vpack.c.b16 %v330, %v329
        %v394 = vpack.c.b16 %v332, %v331
        %v395 = vpack.c.b16 %v334, %v333
        %v396 = vpack.c.b16 %v336, %v335
        %v397 = vpack.c.b16 %v338, %v337
        %v398 = vpack.c.b16 %v340, %v339
        %v399 = vpack.c.b16 %v342, %v341
        %v400 = vpack.c.b16 %v344, %v343
        %v401 = vpack.c.b16 %v346, %v345
        %v402 = vpack.c.b16 %v348, %v347
        %v403 = vpack.c.b16 %v350, %v349
        %v404 = vpack.c.b16 %v352, %v351
        %v405 = vpack.c.b16 %v354, %v353
        %v406 = vpack.c.b16 %v356, %v355
        %v407 = vpack.c.b16 %v358, %v357
        %v408 = vpack.c.b16 %v360, %v359
        %v409 = vpack.c.b16 %v362, %v361
        %v410 = vpack.c.b16 %v364, %v363
        %v411 = vpack.c.b16 %v366, %v365
        %v412 = vpack.c.b16 %v368, %v367
        %v413 = vpack.c.b16 %v370, %v369
        %v414 = vpack.c.b16 %v372, %v371
        %v415 = vpack.c.b16 %v374, %v373
        %v416 = vpack.c.b16 %v376, %v375
        %v417 = vpack.c.b16 %v378, %v377
        %v418 = vpack.c.b16 %v380, %v379
        %v419 = vpack.c.b16 %v382, %v381
        %v420 = vpack.c.b16 %v384, %v383
        %v421 = vpack.c.b16 %v386, %v385
        %v422 = vpack.c.b16 %v388, %v387
        %v423 = vpack.c.b16 %v390, %v389
        %v424 = vpack.c.b16 %v392, %v391
        %v429 = vunpack.c.l.b16 %v257
        %v430 = vunpack.c.l.b16 %v258
        %v431 = vunpack.c.l.b16 %v259
        %v432 = vunpack.c.l.b16 %v260
        %v433 = vpack.c.b16 %v430, %v429
        %v434 = vpack.c.b16 %v432, %v431
        %vm437 = vcmask 261120
        %v439 = vsel %vm437, %v393, 0
        %v442 = vsel %vm437, %v394, 0
        %v445 = vsel %vm437, %v395, 0
        %v448 = vsel %vm437, %v396, 0
        %v451 = vsel %vm437, %v397, 0
        %v454 = vsel %vm437, %v398, 0
        %v457 = vsel %vm437, %v399, 0
        %v460 = vsel %vm437, %v400, 0
        %v463 = vsel %vm437, %v401, 0
        %v466 = vsel %vm437, %v402, 0
        %v469 = vsel %vm437, %v403, 0
        %v472 = vsel %vm437, %v404, 0
        %v475 = vsel %vm437, %v405, 0
        %v478 = vsel %vm437, %v406, 0
        %v481 = vsel %vm437, %v407, 0
        %v484 = vsel %vm437, %v408, 0
        %v487 = vsel %vm437, %v409, 0
        %v490 = vsel %vm437, %v410, 0
        %v493 = vsel %vm437, %v411, 0
        %v496 = vsel %vm437, %v412, 0
        %v499 = vsel %vm437, %v413, 0
        %v502 = vsel %vm437, %v414, 0
        %v505 = vsel %vm437, %v415, 0
        %v508 = vsel %vm437, %v416, 0
        %v511 = vsel %vm437, %v417, 0
        %v514 = vsel %vm437, %v418, 0
        %v517 = vsel %vm437, %v419, 0
        %v520 = vsel %vm437, %v420, 0
        %v523 = vsel %vm437, %v421, 0
        %v526 = vsel %vm437, %v422, 0
        %v529 = vsel %vm437, %v423, 0
        %v532 = vsel %vm437, %v424, 0
        %534 = vmatpush.bf16.msra.mxu0 0
        %535 = vmatpush.bf16.msra.mxu0 0
        %536 = vmatpush.bf16.msra.mxu0 0
        %537 = vmatpush.bf16.msra.mxu0 0
        %538 = vmatpush.bf16.msra.mxu0 0
        %539 = vmatpush.bf16.msra.mxu0 0
        %540 = vmatpush.bf16.msra.mxu0 %v434
        %541 = vmatpush.bf16.msra.mxu0 %v433
        %542 = vmatmul.bf16.gmra.mxu0 %v439
        %v543 = vpop.f32.mrf.mxu0
        %v544 = vadd.f32 %v263, %v543
        %v545 = vpop.f32.mrf.mxu0
        %v546 = vadd.f32 %v263, %v545
        %547 = vmatmul.bf16.gmra.mxu0 %v442
        %v548 = vpop.f32.mrf.mxu0
        %v549 = vadd.f32 %v263, %v548
        %v550 = vpop.f32.mrf.mxu0
        %v551 = vadd.f32 %v263, %v550
        %552 = vmatmul.bf16.gmra.mxu0 %v445
        %v553 = vpop.f32.mrf.mxu0
        %v554 = vadd.f32 %v263, %v553
        %v555 = vpop.f32.mrf.mxu0
        %v556 = vadd.f32 %v263, %v555
        %557 = vmatmul.bf16.gmra.mxu0 %v448
        %v558 = vpop.f32.mrf.mxu0
        %v559 = vadd.f32 %v263, %v558
        %v560 = vpop.f32.mrf.mxu0
        %v561 = vadd.f32 %v263, %v560
        %562 = vmatmul.bf16.gmra.mxu0 %v451
        %v563 = vpop.f32.mrf.mxu0
        %v564 = vadd.f32 %v263, %v563
        %v565 = vpop.f32.mrf.mxu0
        %v566 = vadd.f32 %v263, %v565
        %567 = vmatmul.bf16.gmra.mxu0 %v454
        %v568 = vpop.f32.mrf.mxu0
        %v569 = vadd.f32 %v263, %v568
        %v570 = vpop.f32.mrf.mxu0
        %v571 = vadd.f32 %v263, %v570
        %572 = vmatmul.bf16.gmra.mxu0 %v457
        %v573 = vpop.f32.mrf.mxu0
        %v574 = vadd.f32 %v263, %v573
        %v575 = vpop.f32.mrf.mxu0
        %v576 = vadd.f32 %v263, %v575
        %577 = vmatmul.bf16.gmra.mxu0 %v460
        %v578 = vpop.f32.mrf.mxu0
        %v579 = vadd.f32 %v263, %v578
        %v580 = vpop.f32.mrf.mxu0
        %v581 = vadd.f32 %v263, %v580
        %582 = vmatmul.bf16.gmra.mxu0 %v463
        %v583 = vpop.f32.mrf.mxu0
        %v584 = vadd.f32 %v263, %v583
        %v585 = vpop.f32.mrf.mxu0
        %v586 = vadd.f32 %v263, %v585
        %587 = vmatmul.bf16.gmra.mxu0 %v466
        %v588 = vpop.f32.mrf.mxu0
        %v589 = vadd.f32 %v263, %v588
        %v590 = vpop.f32.mrf.mxu0
        %v591 = vadd.f32 %v263, %v590
        %592 = vmatmul.bf16.gmra.mxu0 %v469
        %v593 = vpop.f32.mrf.mxu0
        %v594 = vadd.f32 %v263, %v593
        %v595 = vpop.f32.mrf.mxu0
        %v596 = vadd.f32 %v263, %v595
        %597 = vmatmul.bf16.gmra.mxu0 %v472
        %v598 = vpop.f32.mrf.mxu0
        %v599 = vadd.f32 %v263, %v598
        %v600 = vpop.f32.mrf.mxu0
        %v601 = vadd.f32 %v263, %v600
        %602 = vmatmul.bf16.gmra.mxu0 %v475
        %v603 = vpop.f32.mrf.mxu0
        %v604 = vadd.f32 %v263, %v603
        %v605 = vpop.f32.mrf.mxu0
        %v606 = vadd.f32 %v263, %v605
        %607 = vmatmul.bf16.gmra.mxu0 %v478
        %v608 = vpop.f32.mrf.mxu0
        %v609 = vadd.f32 %v263, %v608
        %v610 = vpop.f32.mrf.mxu0
        %v611 = vadd.f32 %v263, %v610
        %612 = vmatmul.bf16.gmra.mxu0 %v481
        %v613 = vpop.f32.mrf.mxu0
        %v614 = vadd.f32 %v263, %v613
        %v615 = vpop.f32.mrf.mxu0
        %v616 = vadd.f32 %v263, %v615
        %617 = vmatmul.bf16.gmra.mxu0 %v484
        %v618 = vpop.f32.mrf.mxu0
        %v619 = vadd.f32 %v263, %v618
        %v620 = vpop.f32.mrf.mxu0
        %v621 = vadd.f32 %v263, %v620
        %622 = vmatmul.bf16.gmra.mxu0 %v487
        %v623 = vpop.f32.mrf.mxu0
        %v624 = vadd.f32 %v263, %v623
        %v625 = vpop.f32.mrf.mxu0
        %v626 = vadd.f32 %v263, %v625
        %627 = vmatmul.bf16.gmra.mxu0 %v490
        %v628 = vpop.f32.mrf.mxu0
        %v629 = vadd.f32 %v263, %v628
        %v630 = vpop.f32.mrf.mxu0
        %v631 = vadd.f32 %v263, %v630
        %632 = vmatmul.bf16.gmra.mxu0 %v493
        %v633 = vpop.f32.mrf.mxu0
        %v634 = vadd.f32 %v263, %v633
        %v635 = vpop.f32.mrf.mxu0
        %v636 = vadd.f32 %v263, %v635
        %637 = vmatmul.bf16.gmra.mxu0 %v496
        %v638 = vpop.f32.mrf.mxu0
        %v639 = vadd.f32 %v263, %v638
        %v640 = vpop.f32.mrf.mxu0
        %v641 = vadd.f32 %v263, %v640
        %642 = vmatmul.bf16.gmra.mxu0 %v499
        %v643 = vpop.f32.mrf.mxu0
        %v644 = vadd.f32 %v263, %v643
        %v645 = vpop.f32.mrf.mxu0
        %v646 = vadd.f32 %v263, %v645
        %647 = vmatmul.bf16.gmra.mxu0 %v502
        %v648 = vpop.f32.mrf.mxu0
        %v649 = vadd.f32 %v263, %v648
        %v650 = vpop.f32.mrf.mxu0
        %v651 = vadd.f32 %v263, %v650
        %652 = vmatmul.bf16.gmra.mxu0 %v505
        %v653 = vpop.f32.mrf.mxu0
        %v654 = vadd.f32 %v263, %v653
        %v655 = vpop.f32.mrf.mxu0
        %v656 = vadd.f32 %v263, %v655
        %657 = vmatmul.bf16.gmra.mxu0 %v508
        %v658 = vpop.f32.mrf.mxu0
        %v659 = vadd.f32 %v263, %v658
        %v660 = vpop.f32.mrf.mxu0
        %v661 = vadd.f32 %v263, %v660
        %662 = vmatmul.bf16.gmra.mxu0 %v511
        %v663 = vpop.f32.mrf.mxu0
        %v664 = vadd.f32 %v263, %v663
        %v665 = vpop.f32.mrf.mxu0
        %v666 = vadd.f32 %v263, %v665
        %667 = vmatmul.bf16.gmra.mxu0 %v514
        %v668 = vpop.f32.mrf.mxu0
        %v669 = vadd.f32 %v263, %v668
        %v670 = vpop.f32.mrf.mxu0
        %v671 = vadd.f32 %v263, %v670
        %672 = vmatmul.bf16.gmra.mxu0 %v517
        %v673 = vpop.f32.mrf.mxu0
        %v674 = vadd.f32 %v263, %v673
        %v675 = vpop.f32.mrf.mxu0
        %v676 = vadd.f32 %v263, %v675
        %677 = vmatmul.bf16.gmra.mxu0 %v520
        %v678 = vpop.f32.mrf.mxu0
        %v679 = vadd.f32 %v263, %v678
        %v680 = vpop.f32.mrf.mxu0
        %v681 = vadd.f32 %v263, %v680
        %682 = vmatmul.bf16.gmra.mxu0 %v523
        %v683 = vpop.f32.mrf.mxu0
        %v684 = vadd.f32 %v263, %v683
        %v685 = vpop.f32.mrf.mxu0
        %v686 = vadd.f32 %v263, %v685
        %687 = vmatmul.bf16.gmra.mxu0 %v526
        %v688 = vpop.f32.mrf.mxu0
        %v689 = vadd.f32 %v263, %v688
        %v690 = vpop.f32.mrf.mxu0
        %v691 = vadd.f32 %v263, %v690
        %692 = vmatmul.bf16.gmra.mxu0 %v529
        %v693 = vpop.f32.mrf.mxu0
        %v694 = vadd.f32 %v263, %v693
        %v695 = vpop.f32.mrf.mxu0
        %v696 = vadd.f32 %v263, %v695
        %697 = vmatmul.bf16.gmra.mxu0 %v532
        %v698 = vpop.f32.mrf.mxu0
        %v699 = vadd.f32 %v263, %v698
        %v700 = vpop.f32.mrf.mxu0
        %v701 = vadd.f32 %v263, %v700
        %702 = vdwg.mxu0
        %vm703 = vcmask 105472
        %704 = vst.msk [vmem:[%s172] sm:$0xff] %vm703, %v544
        %705 = vst.msk [vmem:[%s172 + $0x8] sm:$0xff] %vm703, %v546
        %706 = vst.msk [vmem:[%s172 + $0x10] sm:$0xff] %vm703, %v549
        %707 = vst.msk [vmem:[%s172 + $0x18] sm:$0xff] %vm703, %v551
        %708 = vst.msk [vmem:[%s172 + $0x20] sm:$0xff] %vm703, %v554
        %709 = vst.msk [vmem:[%s172 + $0x28] sm:$0xff] %vm703, %v556
        %710 = vst.msk [vmem:[%s172 + $0x30] sm:$0xff] %vm703, %v559
        %711 = vst.msk [vmem:[%s172 + $0x38] sm:$0xff] %vm703, %v561
        %712 = vst.msk [vmem:[%s172 + $0x40] sm:$0xff] %vm703, %v564
        %713 = vst.msk [vmem:[%s172 + $0x48] sm:$0xff] %vm703, %v566
        %714 = vst.msk [vmem:[%s172 + $0x50] sm:$0xff] %vm703, %v569
        %715 = vst.msk [vmem:[%s172 + $0x58] sm:$0xff] %vm703, %v571
        %716 = vst.msk [vmem:[%s172 + $0x60] sm:$0xff] %vm703, %v574
        %717 = vst.msk [vmem:[%s172 + $0x68] sm:$0xff] %vm703, %v576
        %718 = vst.msk [vmem:[%s172 + $0x70] sm:$0xff] %vm703, %v579
        %719 = vst.msk [vmem:[%s172 + $0x78] sm:$0xff] %vm703, %v581
        %720 = vst.msk [vmem:[%s172 + $0x80] sm:$0xff] %vm703, %v584
        %721 = vst.msk [vmem:[%s172 + $0x88] sm:$0xff] %vm703, %v586
        %722 = vst.msk [vmem:[%s172 + $0x90] sm:$0xff] %vm703, %v589
        %723 = vst.msk [vmem:[%s172 + $0x98] sm:$0xff] %vm703, %v591
        %724 = vst.msk [vmem:[%s172 + $0xa0] sm:$0xff] %vm703, %v594
        %725 = vst.msk [vmem:[%s172 + $0xa8] sm:$0xff] %vm703, %v596
        %726 = vst.msk [vmem:[%s172 + $0xb0] sm:$0xff] %vm703, %v599
        %727 = vst.msk [vmem:[%s172 + $0xb8] sm:$0xff] %vm703, %v601
        %728 = vst.msk [vmem:[%s172 + $0xc0] sm:$0xff] %vm703, %v604
        %729 = vst.msk [vmem:[%s172 + $0xc8] sm:$0xff] %vm703, %v606
        %730 = vst.msk [vmem:[%s172 + $0xd0] sm:$0xff] %vm703, %v609
        %731 = vst.msk [vmem:[%s172 + $0xd8] sm:$0xff] %vm703, %v611
        %732 = vst.msk [vmem:[%s172 + $0xe0] sm:$0xff] %vm703, %v614
        %733 = vst.msk [vmem:[%s172 + $0xe8] sm:$0xff] %vm703, %v616
        %734 = vst.msk [vmem:[%s172 + $0xf0] sm:$0xff] %vm703, %v619
        %735 = vst.msk [vmem:[%s172 + $0xf8] sm:$0xff] %vm703, %v621
        %736 = vst.msk [vmem:[%s172 + $0x100] sm:$0xff] %vm703, %v624
        %737 = vst.msk [vmem:[%s172 + $0x108] sm:$0xff] %vm703, %v626
        %738 = vst.msk [vmem:[%s172 + $0x110] sm:$0xff] %vm703, %v629
        %739 = vst.msk [vmem:[%s172 + $0x118] sm:$0xff] %vm703, %v631
        %740 = vst.msk [vmem:[%s172 + $0x120] sm:$0xff] %vm703, %v634
        %741 = vst.msk [vmem:[%s172 + $0x128] sm:$0xff] %vm703, %v636
        %742 = vst.msk [vmem:[%s172 + $0x130] sm:$0xff] %vm703, %v639
        %743 = vst.msk [vmem:[%s172 + $0x138] sm:$0xff] %vm703, %v641
        %744 = vst.msk [vmem:[%s172 + $0x140] sm:$0xff] %vm703, %v644
        %745 = vst.msk [vmem:[%s172 + $0x148] sm:$0xff] %vm703, %v646
        %746 = vst.msk [vmem:[%s172 + $0x150] sm:$0xff] %vm703, %v649
        %747 = vst.msk [vmem:[%s172 + $0x158] sm:$0xff] %vm703, %v651
        %748 = vst.msk [vmem:[%s172 + $0x160] sm:$0xff] %vm703, %v654
        %749 = vst.msk [vmem:[%s172 + $0x168] sm:$0xff] %vm703, %v656
        %750 = vst.msk [vmem:[%s172 + $0x170] sm:$0xff] %vm703, %v659
        %751 = vst.msk [vmem:[%s172 + $0x178] sm:$0xff] %vm703, %v661
        %752 = vst.msk [vmem:[%s172 + $0x180] sm:$0xff] %vm703, %v664
        %753 = vst.msk [vmem:[%s172 + $0x188] sm:$0xff] %vm703, %v666
        %754 = vst.msk [vmem:[%s172 + $0x190] sm:$0xff] %vm703, %v669
        %755 = vst.msk [vmem:[%s172 + $0x198] sm:$0xff] %vm703, %v671
        %756 = vst.msk [vmem:[%s172 + $0x1a0] sm:$0xff] %vm703, %v674
        %757 = vst.msk [vmem:[%s172 + $0x1a8] sm:$0xff] %vm703, %v676
        %758 = vst.msk [vmem:[%s172 + $0x1b0] sm:$0xff] %vm703, %v679
        %759 = vst.msk [vmem:[%s172 + $0x1b8] sm:$0xff] %vm703, %v681
        %760 = vst.msk [vmem:[%s172 + $0x1c0] sm:$0xff] %vm703, %v684
        %761 = vst.msk [vmem:[%s172 + $0x1c8] sm:$0xff] %vm703, %v686
        %762 = vst.msk [vmem:[%s172 + $0x1d0] sm:$0xff] %vm703, %v689
        %763 = vst.msk [vmem:[%s172 + $0x1d8] sm:$0xff] %vm703, %v691
        %764 = vst.msk [vmem:[%s172 + $0x1e0] sm:$0xff] %vm703, %v694
        %765 = vst.msk [vmem:[%s172 + $0x1e8] sm:$0xff] %vm703, %v696
        %766 = vst.msk [vmem:[%s172 + $0x1f0] sm:$0xff] %vm703, %v699
        %767 = vst.msk [vmem:[%s172 + $0x1f8] sm:$0xff] %vm703, %v701
        %s768 = sand.u32 %s90, 1
        %s769 = sand.u32 %s90, 1
        %s770 = smul.addr %s769, 512
        %s771 = scalar_lea.vmem [#allocation2], %s770
        // Predicated region
        $region33: #{tpu_custom_call.1} parent=31 // pred_check
          %p772 = pneg %p100
        $region34: #{tpu_custom_call.1} parent=31 // pred_check_branch
          %774 = sbr.rel (%p772) target = $region36
        $region35: #{tpu_custom_call.1} parent=31 // pred_region
          %s775 = smul.u32 64, %s14
          %s776 = ssub.s32 125, %s775
          %p777 = scmp.lt.s32.totalorder %s776, 64
          %s778 = scalar_select %p777, %s776, 64
          %s779 = smul.u32 8, %s778
          %p780 = scmp.ne.s32.totalorder 0, %s779
          %s781 = smul.addr %s775, 8
          %s782 = scalar_lea.vmem %s3, %s781
          // Predicated region
          $region37: #{tpu_custom_call.1} parent=35 // pred_check
            %p783 = pneg %p780
          $region38: #{tpu_custom_call.1} parent=35 // pred_check_branch
            %785 = sbr.rel (%p783) target = $region40
          $region39: #{tpu_custom_call.1} parent=35 // pred_region
            // Predicated region
            $region41: #{tpu_custom_call.1} parent=39 // pred_check
              _
            $region42: #{tpu_custom_call.1} parent=39 // pred_check_branch
              %787 = sbr.rel (0) target = $region44
            $region43: #{tpu_custom_call.1} parent=39 // pred_region
              // Predicated region
              $region63: #{tpu_custom_call.1} parent=43 // pred_check
                _
              $region64: #{tpu_custom_call.1} parent=43 // pred_check_branch
                %899 = sbr.rel (0) target = $region66
              $region65: #{tpu_custom_call.1} parent=43 // pred_region
                %s900 = sshrl.u32 %s778, 5
                // While loop
                $region67: #{tpu_custom_call.1} parent=65 // loop_pre_header
                  _
                $region68: #{tpu_custom_call.1} parent=65 // loop_header
                  %s902 = sphi 0, %s904
                  %p903 = scmp.ge.s32.totalorder %s902, %s900
                  %s907 = sphi 0, %s976
                  %s908 = sphi %s771, %s979
                  %s909 = sphi %s782, %s980
                $region69: #{tpu_custom_call.1} parent=65 // loop_header_branch
                  %906 = sbr.rel (%p903) target = $region73
                $region70: #{tpu_custom_call.1} parent=65 // loop_body
                  %v910 = vld [vmem:[%s908] sm:$0xff]
                  %911 = vst [vmem:[%s909] sm:$0xff] %v910
                  %v912 = vld [vmem:[%s908 + $0x8] sm:$0xff]
                  %913 = vst [vmem:[%s909 + $0x8] sm:$0xff] %v912
                  %v914 = vld [vmem:[%s908 + $0x10] sm:$0xff]
                  %915 = vst [vmem:[%s909 + $0x10] sm:$0xff] %v914
                  %v916 = vld [vmem:[%s908 + $0x18] sm:$0xff]
                  %917 = vst [vmem:[%s909 + $0x18] sm:$0xff] %v916
                  %v918 = vld [vmem:[%s908 + $0x20] sm:$0xff]
                  %919 = vst [vmem:[%s909 + $0x20] sm:$0xff] %v918
                  %v920 = vld [vmem:[%s908 + $0x28] sm:$0xff]
                  %921 = vst [vmem:[%s909 + $0x28] sm:$0xff] %v920
                  %v922 = vld [vmem:[%s908 + $0x30] sm:$0xff]
                  %923 = vst [vmem:[%s909 + $0x30] sm:$0xff] %v922
                  %v924 = vld [vmem:[%s908 + $0x38] sm:$0xff]
                  %925 = vst [vmem:[%s909 + $0x38] sm:$0xff] %v924
                  %v926 = vld [vmem:[%s908 + $0x40] sm:$0xff]
                  %927 = vst [vmem:[%s909 + $0x40] sm:$0xff] %v926
                  %v928 = vld [vmem:[%s908 + $0x48] sm:$0xff]
                  %929 = vst [vmem:[%s909 + $0x48] sm:$0xff] %v928
                  %v930 = vld [vmem:[%s908 + $0x50] sm:$0xff]
                  %931 = vst [vmem:[%s909 + $0x50] sm:$0xff] %v930
                  %v932 = vld [vmem:[%s908 + $0x58] sm:$0xff]
                  %933 = vst [vmem:[%s909 + $0x58] sm:$0xff] %v932
                  %v934 = vld [vmem:[%s908 + $0x60] sm:$0xff]
                  %935 = vst [vmem:[%s909 + $0x60] sm:$0xff] %v934
                  %v936 = vld [vmem:[%s908 + $0x68] sm:$0xff]
                  %937 = vst [vmem:[%s909 + $0x68] sm:$0xff] %v936
                  %v938 = vld [vmem:[%s908 + $0x70] sm:$0xff]
                  %939 = vst [vmem:[%s909 + $0x70] sm:$0xff] %v938
                  %v940 = vld [vmem:[%s908 + $0x78] sm:$0xff]
                  %941 = vst [vmem:[%s909 + $0x78] sm:$0xff] %v940
                  %v942 = vld [vmem:[%s908 + $0x80] sm:$0xff]
                  %943 = vst [vmem:[%s909 + $0x80] sm:$0xff] %v942
                  %v944 = vld [vmem:[%s908 + $0x88] sm:$0xff]
                  %945 = vst [vmem:[%s909 + $0x88] sm:$0xff] %v944
                  %v946 = vld [vmem:[%s908 + $0x90] sm:$0xff]
                  %947 = vst [vmem:[%s909 + $0x90] sm:$0xff] %v946
                  %v948 = vld [vmem:[%s908 + $0x98] sm:$0xff]
                  %949 = vst [vmem:[%s909 + $0x98] sm:$0xff] %v948
                  %v950 = vld [vmem:[%s908 + $0xa0] sm:$0xff]
                  %951 = vst [vmem:[%s909 + $0xa0] sm:$0xff] %v950
                  %v952 = vld [vmem:[%s908 + $0xa8] sm:$0xff]
                  %953 = vst [vmem:[%s909 + $0xa8] sm:$0xff] %v952
                  %v954 = vld [vmem:[%s908 + $0xb0] sm:$0xff]
                  %955 = vst [vmem:[%s909 + $0xb0] sm:$0xff] %v954
                  %v956 = vld [vmem:[%s908 + $0xb8] sm:$0xff]
                  %957 = vst [vmem:[%s909 + $0xb8] sm:$0xff] %v956
                  %v958 = vld [vmem:[%s908 + $0xc0] sm:$0xff]
                  %959 = vst [vmem:[%s909 + $0xc0] sm:$0xff] %v958
                  %v960 = vld [vmem:[%s908 + $0xc8] sm:$0xff]
                  %961 = vst [vmem:[%s909 + $0xc8] sm:$0xff] %v960
                  %v962 = vld [vmem:[%s908 + $0xd0] sm:$0xff]
                  %963 = vst [vmem:[%s909 + $0xd0] sm:$0xff] %v962
                  %v964 = vld [vmem:[%s908 + $0xd8] sm:$0xff]
                  %965 = vst [vmem:[%s909 + $0xd8] sm:$0xff] %v964
                  %v966 = vld [vmem:[%s908 + $0xe0] sm:$0xff]
                  %967 = vst [vmem:[%s909 + $0xe0] sm:$0xff] %v966
                  %v968 = vld [vmem:[%s908 + $0xe8] sm:$0xff]
                  %969 = vst [vmem:[%s909 + $0xe8] sm:$0xff] %v968
                  %v970 = vld [vmem:[%s908 + $0xf0] sm:$0xff]
                  %971 = vst [vmem:[%s909 + $0xf0] sm:$0xff] %v970
                  %v972 = vld [vmem:[%s908 + $0xf8] sm:$0xff]
                  %973 = vst [vmem:[%s909 + $0xf8] sm:$0xff] %v972
                  %s974 = sadd.s32 1, %s907
                  %p975 = scmp.ge.s32.totalorder %s974, %s900
                  %s976 = scalar_select %p975, 0, %s974
                  %s977 = smul.u32 %s976, 256
                  %s978 = smul.u32 %s976, 256
                  %s979 = scalar_lea.vmem %s771, %s977 [#allocation2]
                  %s980 = scalar_lea.vmem %s782, %s978
                $region71: #{tpu_custom_call.1} parent=65 // loop_footer
                  %s904 = sadd.s32 %s902, 1
                $region72: #{tpu_custom_call.1} parent=65 // loop_footer_branch
                  %901 = sbr.rel target = $region68
                $region73: #{tpu_custom_call.1} parent=65 // loop_exit
                  _
                %s981 = sshrl.u32 %s778, 5
                %s982 = sand.u32 %s778, 31
                %s983 = smul.u32 %s981, 32
                %s984 = smul.u32 8, %s983
                %s985 = scalar_lea.vmem %s771, %s984 [#allocation2]
                %s986 = smul.u32 8, %s983
                %s987 = scalar_lea.vmem %s782, %s986
                // While loop
                $region74: #{tpu_custom_call.1} parent=65 // loop_pre_header
                  _
                $region75: #{tpu_custom_call.1} parent=65 // loop_header
                  %s989 = sphi 0, %s991
                  %p990 = scmp.ge.s32.totalorder %s989, %s982
                  %s994 = sphi 0, %s1001
                  %s995 = sphi %s985, %s1004
                  %s996 = sphi %s987, %s1005
                $region76: #{tpu_custom_call.1} parent=65 // loop_header_branch
                  %993 = sbr.rel (%p990) target = $region80
                $region77: #{tpu_custom_call.1} parent=65 // loop_body
                  %v997 = vld [vmem:[%s995] sm:$0xff]
                  %998 = vst [vmem:[%s996] sm:$0xff] %v997
                  %s999 = sadd.s32 1, %s994
                  %p1000 = scmp.ge.s32.totalorder %s999, %s982
                  %s1001 = scalar_select %p1000, 0, %s999
                  %s1002 = smul.u32 %s1001, 8
                  %s1003 = smul.u32 %s1001, 8
                  %s1004 = scalar_lea.vmem %s985, %s1002 [#allocation2]
                  %s1005 = scalar_lea.vmem %s987, %s1003
                $region78: #{tpu_custom_call.1} parent=65 // loop_footer
                  %s991 = sadd.s32 %s989, 1
                $region79: #{tpu_custom_call.1} parent=65 // loop_footer_branch
                  %988 = sbr.rel target = $region75
                $region80: #{tpu_custom_call.1} parent=65 // loop_exit
                  _
              $region66: #{tpu_custom_call.1} parent=43 // pred_fallthru
                _
              // Predicated region
              $region81: #{tpu_custom_call.1} parent=43 // pred_check
                _
              $region82: #{tpu_custom_call.1} parent=43 // pred_check_branch
                %1007 = sbr.rel target = $region84
              $region83: #{tpu_custom_call.1} parent=43 // pred_region
                _
              $region84: #{tpu_custom_call.1} parent=43 // pred_fallthru
                _
            $region44: #{tpu_custom_call.1} parent=39 // pred_fallthru
              _
            // Predicated region
            $region45: #{tpu_custom_call.1} parent=39 // pred_check
              _
            $region46: #{tpu_custom_call.1} parent=39 // pred_check_branch
              %789 = sbr.rel target = $region48
            $region47: #{tpu_custom_call.1} parent=39 // pred_region
              %s791 = ssub.s32 256, 1
              %s792 = sshrl.u32 %s778, 5
              // While loop
              $region49: #{tpu_custom_call.1} parent=47 // loop_pre_header
                _
              $region50: #{tpu_custom_call.1} parent=47 // loop_header
                %s794 = sphi 0, %s796
                %p795 = scmp.ge.s32.totalorder %s794, %s792
                %s799 = sphi 0, %s868
                %s800 = sphi %s771, %s871
                %s801 = sphi %s782, %s872
              $region51: #{tpu_custom_call.1} parent=47 // loop_header_branch
                %798 = sbr.rel (%p795) target = $region55
              $region52: #{tpu_custom_call.1} parent=47 // loop_body
                %v802 = vld [vmem:[%s800] sm:%s791]
                %803 = vst [vmem:[%s801] sm:%s791] %v802
                %v804 = vld [vmem:[%s800 + $0x8] sm:%s791]
                %805 = vst [vmem:[%s801 + $0x8] sm:%s791] %v804
                %v806 = vld [vmem:[%s800 + $0x10] sm:%s791]
                %807 = vst [vmem:[%s801 + $0x10] sm:%s791] %v806
                %v808 = vld [vmem:[%s800 + $0x18] sm:%s791]
                %809 = vst [vmem:[%s801 + $0x18] sm:%s791] %v808
                %v810 = vld [vmem:[%s800 + $0x20] sm:%s791]
                %811 = vst [vmem:[%s801 + $0x20] sm:%s791] %v810
                %v812 = vld [vmem:[%s800 + $0x28] sm:%s791]
                %813 = vst [vmem:[%s801 + $0x28] sm:%s791] %v812
                %v814 = vld [vmem:[%s800 + $0x30] sm:%s791]
                %815 = vst [vmem:[%s801 + $0x30] sm:%s791] %v814
                %v816 = vld [vmem:[%s800 + $0x38] sm:%s791]
                %817 = vst [vmem:[%s801 + $0x38] sm:%s791] %v816
                %v818 = vld [vmem:[%s800 + $0x40] sm:%s791]
                %819 = vst [vmem:[%s801 + $0x40] sm:%s791] %v818
                %v820 = vld [vmem:[%s800 + $0x48] sm:%s791]
                %821 = vst [vmem:[%s801 + $0x48] sm:%s791] %v820
                %v822 = vld [vmem:[%s800 + $0x50] sm:%s791]
                %823 = vst [vmem:[%s801 + $0x50] sm:%s791] %v822
                %v824 = vld [vmem:[%s800 + $0x58] sm:%s791]
                %825 = vst [vmem:[%s801 + $0x58] sm:%s791] %v824
                %v826 = vld [vmem:[%s800 + $0x60] sm:%s791]
                %827 = vst [vmem:[%s801 + $0x60] sm:%s791] %v826
                %v828 = vld [vmem:[%s800 + $0x68] sm:%s791]
                %829 = vst [vmem:[%s801 + $0x68] sm:%s791] %v828
                %v830 = vld [vmem:[%s800 + $0x70] sm:%s791]
                %831 = vst [vmem:[%s801 + $0x70] sm:%s791] %v830
                %v832 = vld [vmem:[%s800 + $0x78] sm:%s791]
                %833 = vst [vmem:[%s801 + $0x78] sm:%s791] %v832
                %v834 = vld [vmem:[%s800 + $0x80] sm:%s791]
                %835 = vst [vmem:[%s801 + $0x80] sm:%s791] %v834
                %v836 = vld [vmem:[%s800 + $0x88] sm:%s791]
                %837 = vst [vmem:[%s801 + $0x88] sm:%s791] %v836
                %v838 = vld [vmem:[%s800 + $0x90] sm:%s791]
                %839 = vst [vmem:[%s801 + $0x90] sm:%s791] %v838
                %v840 = vld [vmem:[%s800 + $0x98] sm:%s791]
                %841 = vst [vmem:[%s801 + $0x98] sm:%s791] %v840
                %v842 = vld [vmem:[%s800 + $0xa0] sm:%s791]
                %843 = vst [vmem:[%s801 + $0xa0] sm:%s791] %v842
                %v844 = vld [vmem:[%s800 + $0xa8] sm:%s791]
                %845 = vst [vmem:[%s801 + $0xa8] sm:%s791] %v844
                %v846 = vld [vmem:[%s800 + $0xb0] sm:%s791]
                %847 = vst [vmem:[%s801 + $0xb0] sm:%s791] %v846
                %v848 = vld [vmem:[%s800 + $0xb8] sm:%s791]
                %849 = vst [vmem:[%s801 + $0xb8] sm:%s791] %v848
                %v850 = vld [vmem:[%s800 + $0xc0] sm:%s791]
                %851 = vst [vmem:[%s801 + $0xc0] sm:%s791] %v850
                %v852 = vld [vmem:[%s800 + $0xc8] sm:%s791]
                %853 = vst [vmem:[%s801 + $0xc8] sm:%s791] %v852
                %v854 = vld [vmem:[%s800 + $0xd0] sm:%s791]
                %855 = vst [vmem:[%s801 + $0xd0] sm:%s791] %v854
                %v856 = vld [vmem:[%s800 + $0xd8] sm:%s791]
                %857 = vst [vmem:[%s801 + $0xd8] sm:%s791] %v856
                %v858 = vld [vmem:[%s800 + $0xe0] sm:%s791]
                %859 = vst [vmem:[%s801 + $0xe0] sm:%s791] %v858
                %v860 = vld [vmem:[%s800 + $0xe8] sm:%s791]
                %861 = vst [vmem:[%s801 + $0xe8] sm:%s791] %v860
                %v862 = vld [vmem:[%s800 + $0xf0] sm:%s791]
                %863 = vst [vmem:[%s801 + $0xf0] sm:%s791] %v862
                %v864 = vld [vmem:[%s800 + $0xf8] sm:%s791]
                %865 = vst [vmem:[%s801 + $0xf8] sm:%s791] %v864
                %s866 = sadd.s32 1, %s799
                %p867 = scmp.ge.s32.totalorder %s866, %s792
                %s868 = scalar_select %p867, 0, %s866
                %s869 = smul.u32 %s868, 256
                %s870 = smul.u32 %s868, 256
                %s871 = scalar_lea.vmem %s771, %s869 [#allocation2]
                %s872 = scalar_lea.vmem %s782, %s870
              $region53: #{tpu_custom_call.1} parent=47 // loop_footer
                %s796 = sadd.s32 %s794, 1
              $region54: #{tpu_custom_call.1} parent=47 // loop_footer_branch
                %793 = sbr.rel target = $region50
              $region55: #{tpu_custom_call.1} parent=47 // loop_exit
                _
              %s873 = sshrl.u32 %s778, 5
              %s874 = sand.u32 %s778, 31
              %s875 = smul.u32 %s873, 32
              %s876 = smul.u32 8, %s875
              %s877 = scalar_lea.vmem %s771, %s876 [#allocation2]
              %s878 = smul.u32 8, %s875
              %s879 = scalar_lea.vmem %s782, %s878
              // While loop
              $region56: #{tpu_custom_call.1} parent=47 // loop_pre_header
                _
              $region57: #{tpu_custom_call.1} parent=47 // loop_header
                %s881 = sphi 0, %s883
                %p882 = scmp.ge.s32.totalorder %s881, %s874
                %s886 = sphi 0, %s893
                %s887 = sphi %s877, %s896
                %s888 = sphi %s879, %s897
              $region58: #{tpu_custom_call.1} parent=47 // loop_header_branch
                %885 = sbr.rel (%p882) target = $region62
              $region59: #{tpu_custom_call.1} parent=47 // loop_body
                %v889 = vld [vmem:[%s887] sm:%s791]
                %890 = vst [vmem:[%s888] sm:%s791] %v889
                %s891 = sadd.s32 1, %s886
                %p892 = scmp.ge.s32.totalorder %s891, %s874
                %s893 = scalar_select %p892, 0, %s891
                %s894 = smul.u32 %s893, 8
                %s895 = smul.u32 %s893, 8
                %s896 = scalar_lea.vmem %s877, %s894 [#allocation2]
                %s897 = scalar_lea.vmem %s879, %s895
              $region60: #{tpu_custom_call.1} parent=47 // loop_footer
                %s883 = sadd.s32 %s881, 1
              $region61: #{tpu_custom_call.1} parent=47 // loop_footer_branch
                %880 = sbr.rel target = $region57
              $region62: #{tpu_custom_call.1} parent=47 // loop_exit
                _
            $region48: #{tpu_custom_call.1} parent=39 // pred_fallthru
              _
          $region40: #{tpu_custom_call.1} parent=35 // pred_fallthru
            _
          %1008 = vnop
        $region36: #{tpu_custom_call.1} parent=31 // pred_fallthru
          _
      $region32: #{tpu_custom_call.1} parent=5 // pred_fallthru
        _
      %p1009 = scmp.le.s32.totalorder 2, %s9
      // Predicated region
      $region85: #{tpu_custom_call.1} parent=5 // pred_check
        %p1010 = pneg %p1009
      $region86: #{tpu_custom_call.1} parent=5 // pred_check_branch
        %1012 = sbr.rel (%p1010) target = $region88
      $region87: #{tpu_custom_call.1} parent=5 // pred_region
        %s1013 = ssub.s32 %s9, 2
        // Predicated region
        $region89: #{tpu_custom_call.1} parent=87 // pred_check
          %p1014 = pneg %p106
        $region90: #{tpu_custom_call.1} parent=87 // pred_check_branch
          %1016 = sbr.rel (%p1014) target = $region92
        $region91: #{tpu_custom_call.1} parent=87 // pred_region
          %s1017 = sand.u32 %s91, 1
          %s1018 = sand.u32 %s91, 1
          %s1019 = smul.addr %s1018, 512
          %s1020 = scalar_lea.vmem [#allocation2], %s1019
        $region92: #{tpu_custom_call.1} parent=87 // pred_fallthru
          _
      $region88: #{tpu_custom_call.1} parent=5 // pred_fallthru
        _
    $region6: #{tpu_custom_call.1} parent=1 // loop_footer
      %s13 = sadd.s32 1, %s9
    $region7: #{tpu_custom_call.1} parent=1 // loop_footer_branch
      %8 = sbr.rel target = $region3
    $region8: #{tpu_custom_call.1} parent=1 // loop_exit
      _

</llo_original>
